<compile_context>
chip_gen: v7x
topology: tpu7x:2x2x1
jax: 0.10.0
libtpu: 0.0.40
codegen_flags: <defaults>
</compile_context>

<pallas_src>
import functools

import jax
import jax.numpy as jnp
from jax.experimental import pallas as pl
from jax.experimental.pallas import tpu as pltpu


def _round_up(a, b):
    return (a + b - 1) // b * b


# ---------------------------------------------------------------------------
# Fused GEMM + GLU (+ optional affine/ELU) epilogue kernel.
#   w_ref   : (2*Coutp, K2)   merged (conv1 ++ conv2) weights
#   pat_ref : (K2, TM)        im2col patch columns (lane axis = output pixels)
#   b_ref   : (2*Coutp, 1)    merged bias
#   s_ref   : (Coutp, 1)      [fused only] per-channel scale (BN eval folded)
#   t_ref   : (Coutp, 1)      [fused only] per-channel shift
#   out_ref : (Coutp, TM)     lane-dense output
# ---------------------------------------------------------------------------
def _make_glu_kernel(fuse_bn_elu):
    if fuse_bn_elu:
        def kernel(w_ref, pat_ref, b_ref, s_ref, t_ref, out_ref):
            coutp = out_ref.shape[0]
            acc = jnp.dot(w_ref[...], pat_ref[...],
                          preferred_element_type=jnp.float32)
            acc = acc + b_ref[...]                     # lane-broadcast bias
            y = acc[:coutp, :] * jax.nn.sigmoid(acc[coutp:, :])   # GLU
            y = y * s_ref[...] + t_ref[...]            # folded BN (eval)
            y = jnp.where(y > 0, y, jnp.expm1(y))      # ELU(alpha=1)
            out_ref[...] = y.astype(out_ref.dtype)
    else:
        def kernel(w_ref, pat_ref, b_ref, out_ref):
            coutp = out_ref.shape[0]
            acc = jnp.dot(w_ref[...], pat_ref[...],
                          preferred_element_type=jnp.float32)
            acc = acc + b_ref[...]
            y = acc[:coutp, :] * jax.nn.sigmoid(acc[coutp:, :])   # GLU
            out_ref[...] = y.astype(out_ref.dtype)
    return kernel


# ---------------------------------------------------------------------------
# GluConv2d (encoder block): strided VALID conv, merged-gate fused GEMM.
# ---------------------------------------------------------------------------
@functools.partial(jax.jit, static_argnames=("stride", "fuse_bn_elu"))
def glu_conv2d(x, w1, b1, w2, b2, *, stride,
               bn_scale=None, bn_shift=None, fuse_bn_elu=False):
    """x: (N,Cin,H,W); w*: (Cout,Cin,kh,kw) (PyTorch Conv2d layout); b*: (Cout,)."""
    n, cin, h, w = x.shape
    cout, _, kh, kw = w1.shape
    sh, sw = stride
    oh = (h - kh) // sh + 1
    ow = (w - kw) // sw + 1
    k2 = cin * kh * kw
    m = oh * ow

    coutp = _round_up(cout, 8)
    c2p = 2 * coutp
    tm = min(_round_up(m, 128), 512)
    mp = _round_up(m, tm)

    # merged, channel-padded weights: (2*Coutp, K2)  (ci-major, tap row-major)
    def pad_gate(wt):
        return jnp.pad(wt, ((0, coutp - cout), (0, 0), (0, 0), (0, 0)))

    w_flat = jnp.concatenate([pad_gate(w1), pad_gate(w2)], axis=0).reshape(c2p, k2)
    bc = jnp.concatenate([jnp.pad(b1, (0, coutp - cout)),
                          jnp.pad(b2, (0, coutp - cout))]).reshape(c2p, 1)

    # im2col: one strided slab per (khi, kwi) tap, stacked -> (N, K2, M)
    slabs = [x[:, :, khi:khi + sh * (oh - 1) + 1:sh,
                     kwi:kwi + sw * (ow - 1) + 1:sw]
             for khi in range(kh) for kwi in range(kw)]
    pat = jnp.stack(slabs, axis=2).reshape(n, k2, m)
    pat = jnp.pad(pat, ((0, 0), (0, 0), (0, mp - m)))

    in_specs = [
        pl.BlockSpec((c2p, k2), lambda b, mi: (0, 0)),
        pl.BlockSpec((None, k2, tm), lambda b, mi: (b, 0, mi)),
        pl.BlockSpec((c2p, 1), lambda b, mi: (0, 0)),
    ]
    args = [w_flat, pat, bc]
    if fuse_bn_elu:
        s = jnp.pad(bn_scale, (0, coutp - cout)).reshape(coutp, 1).astype(x.dtype)
        t = jnp.pad(bn_shift, (0, coutp - cout)).reshape(coutp, 1).astype(x.dtype)
        in_specs += [pl.BlockSpec((coutp, 1), lambda b, mi: (0, 0)),
                     pl.BlockSpec((coutp, 1), lambda b, mi: (0, 0))]
        args += [s, t]

    out = pl.pallas_call(
        _make_glu_kernel(fuse_bn_elu),
        out_shape=jax.ShapeDtypeStruct((n, coutp, mp), x.dtype),
        grid_spec=pltpu.PrefetchScalarGridSpec(
            num_scalar_prefetch=0,
            grid=(n, mp // tm),
            in_specs=in_specs,
            out_specs=pl.BlockSpec((None, coutp, tm), lambda b, mi: (b, 0, mi)),
        ),
        compiler_params=pltpu.CompilerParams(
            dimension_semantics=("parallel", "parallel")),
    )(*args)

    return out[:, :cout, :m].reshape(n, cout, oh, ow)


# ---------------------------------------------------------------------------
# GluConvTranspose2d (decoder block): polyphase merged-gate fused GEMM.
# ---------------------------------------------------------------------------
@functools.partial(jax.jit,
                   static_argnames=("stride", "output_padding", "fuse_bn_elu"))
def glu_conv_transpose2d(x, w1, b1, w2, b2, *, stride, output_padding,
                         bn_scale=None, bn_shift=None, fuse_bn_elu=False):
    """x: (N,Cin,H,W); w*: (Cin,Cout,kh,kw) (PyTorch ConvTranspose2d layout); b*: (Cout,).

    Returns conv_t1(x) * sigmoid(conv_t2(x)) (padding=0, dilation=1, groups=1),
    optionally followed by the folded BN(eval) affine + ELU epilogue.
    """
    n, cin, h, w = x.shape
    _, cout, kh, kw = w1.shape
    sh, sw = stride
    oph, opw = output_padding

    ho = (h - 1) * sh + kh + oph
    wo = (w - 1) * sw + kw + opw

    # ---- polyphase geometry ----
    ph, pw = sh, sw                       # phases per spatial dim
    th_n = -(-kh // sh)                   # taps per phase (uniform, zero-padded)
    tw_n = -(-kw // sw)
    oqh = -(-ho // sh)                    # per-phase output extent
    oqw = -(-wo // sw)
    t_total = th_n * tw_n
    k2 = cin * t_total                    # contraction depth
    p_total = ph * pw

    coutp = _round_up(cout, 8)            # sublane-aligned channel count
    c2p = 2 * coutp

    mq = oqh * oqw                        # output pixels per (phase, batch)
    tm = min(_round_up(mq, 128), 512)     # lane-dense pixel tile
    mqp = _round_up(mq, tm)

    # ---- merged + phase-decomposed weights: (P, 2*Coutp, K2) ----
    def pad_gate(wt):                     # (Cin,Cout,kh,kw) -> (Cin,Coutp,kh,kw)
        return jnp.pad(wt, ((0, 0), (0, coutp - cout), (0, 0), (0, 0)))

    wc = jnp.concatenate([pad_gate(w1), pad_gate(w2)], axis=1)  # (Cin,2Coutp,kh,kw)
    bc = jnp.concatenate([jnp.pad(b1, (0, coutp - cout)),
                          jnp.pad(b2, (0, coutp - cout))]).reshape(c2p, 1)

    phase_w = []
    for rh in range(ph):
        for rw in range(pw):
            taps = []
            for thi in range(th_n):
                khi = rh + sh * (th_n - 1 - thi)
                for twi in range(tw_n):
                    kwi = rw + sw * (tw_n - 1 - twi)
                    if khi < kh and kwi < kw:
                        taps.append(wc[:, :, khi, kwi])          # (Cin, 2Coutp)
                    else:
                        taps.append(jnp.zeros((cin, c2p), wc.dtype))
            wp = jnp.stack(taps, axis=1).reshape(k2, c2p)        # ci-major K2
            phase_w.append(wp.T)                                 # (2Coutp, K2)
    w_all = jnp.stack(phase_w, axis=0)                           # (P, 2Coutp, K2)

    # ---- im2col over the UNdilated input (no stride zeros) ----
    x_pad = jnp.pad(x, ((0, 0), (0, 0),
                        (th_n - 1, oqh - h),
                        (tw_n - 1, oqw - w)))
    slabs = [x_pad[:, :, thi:thi + oqh, twi:twi + oqw]           # (N,Cin,OqH,OqW)
             for thi in range(th_n) for twi in range(tw_n)]
    pat = jnp.stack(slabs, axis=2)                               # (N,Cin,T,OqH,OqW)
    pat = pat.reshape(n, k2, mq)                                 # K2-major, contiguous
    pat = jnp.pad(pat, ((0, 0), (0, 0), (0, mqp - mq)))          # lane-dense columns

    in_specs = [
        pl.BlockSpec((None, c2p, k2), lambda p, b, m: (p, 0, 0)),
        pl.BlockSpec((None, k2, tm), lambda p, b, m: (b, 0, m)),
        pl.BlockSpec((c2p, 1), lambda p, b, m: (0, 0)),
    ]
    args = [w_all, pat, bc]
    if fuse_bn_elu:
        s = jnp.pad(bn_scale, (0, coutp - cout)).reshape(coutp, 1).astype(x.dtype)
        t = jnp.pad(bn_shift, (0, coutp - cout)).reshape(coutp, 1).astype(x.dtype)
        in_specs += [pl.BlockSpec((coutp, 1), lambda p, b, m: (0, 0)),
                     pl.BlockSpec((coutp, 1), lambda p, b, m: (0, 0))]
        args += [s, t]

    grid = (p_total, n, mqp // tm)

    out = pl.pallas_call(
        _make_glu_kernel(fuse_bn_elu),
        out_shape=jax.ShapeDtypeStruct((p_total, n, coutp, mqp), x.dtype),
        grid_spec=pltpu.PrefetchScalarGridSpec(
            num_scalar_prefetch=0,
            grid=grid,
            in_specs=in_specs,
            out_specs=pl.BlockSpec((None, None, coutp, tm),
                                   lambda p, b, m: (p, b, 0, m)),
        ),
        compiler_params=pltpu.CompilerParams(
            dimension_semantics=("parallel", "parallel", "parallel")),
    )(*args)

    # ---- phase re-interleave + crop, back to NCHW (single cheap pass) ----
    out = out[:, :, :cout, :mq].reshape(ph, pw, n, cout, oqh, oqw)
    out = jnp.transpose(out, (2, 3, 4, 0, 5, 1))     # (N,Cout,OqH,PH,OqW,PW)
    out = out.reshape(n, cout, oqh * ph, oqw * pw)
    return out[:, :, :ho, :wo]


# ---------------- pure-JAX references (PyTorch semantics) -------------------
def _conv2d_ref(x, w, b, stride):
    y = jax.lax.conv_general_dilated(
        x, w, window_strides=stride, padding="VALID",
        dimension_numbers=("NCHW", "OIHW", "NCHW"),
        precision=jax.lax.Precision.HIGHEST)
    return y + b[None, :, None, None]


def _conv_transpose2d_ref(x, w, b, stride, output_padding):
    kh, kw = w.shape[2], w.shape[3]
    sh, sw = stride
    oph, opw = output_padding
    y = jax.lax.conv_general_dilated(
        x,
        jnp.transpose(w[:, :, ::-1, ::-1], (1, 0, 2, 3)),  # (Cout,Cin,kh,kw)
        window_strides=(1, 1),
        padding=[(kh - 1, kh - 1 + oph), (kw - 1, kw - 1 + opw)],
        lhs_dilation=(sh, sw),
        dimension_numbers=("NCHW", "OIHW", "NCHW"),
        precision=jax.lax.Precision.HIGHEST,
    )
    return y + b[None, :, None, None]


def _glu_conv_ref(x, w1, b1, w2, b2, stride):
    return _conv2d_ref(x, w1, b1, stride) * jax.nn.sigmoid(
        _conv2d_ref(x, w2, b2, stride))


def _glu_convt_ref(x, w1, b1, w2, b2, stride, output_padding):
    o1 = _conv_transpose2d_ref(x, w1, b1, stride, output_padding)
    o2 = _conv_transpose2d_ref(x, w2, b2, stride, output_padding)
    return o1 * jax.nn.sigmoid(o2)


def _bn_elu_ref(y, scale, shift):
    y = y * scale[None, :, None, None] + shift[None, :, None, None]
    return jnp.where(y > 0, y, jnp.expm1(y))


if __name__ == "__main__":
    key = jax.random.PRNGKey(0)

    # ------------------ GluConv2d (encoder) checks ------------------
    enc_configs = [
        # (Cin, Cout, kernel, stride,  N, H, W, fuse)
        (32, 16, (1, 3), (1, 2), 2, 6, 21, False),   # conv1 style
        (16, 32, (1, 3), (1, 2), 2, 6, 11, True),    # conv2 style, fused BN+ELU
        (8,  8,  (3, 3), (2, 2), 2, 9, 9,  False),   # generic 2-D stride path
    ]
    for idx, (cin, cout, ks, st, nb, hh, ww, fuse) in enumerate(enc_configs):
        key, kx, k1, k2, k3, k4, k5, k6 = jax.random.split(key, 8)
        x = jax.random.normal(kx, (nb, cin, hh, ww), jnp.float32)
        wshape = (cout, cin) + ks                   # Conv2d weight layout
        scale = 0.1
        w1 = scale * jax.random.normal(k1, wshape, jnp.float32)
        b1 = scale * jax.random.normal(k2, (cout,), jnp.float32)
        w2 = scale * jax.random.normal(k3, wshape, jnp.float32)
        b2 = scale * jax.random.normal(k4, (cout,), jnp.float32)
        bn_s = 1.0 + 0.1 * jax.random.normal(k5, (cout,), jnp.float32)
        bn_t = 0.1 * jax.random.normal(k6, (cout,), jnp.float32)

        out = glu_conv2d(x, w1, b1, w2, b2, stride=st,
                         bn_scale=bn_s, bn_shift=bn_t, fuse_bn_elu=fuse)
        out = jax.block_until_ready(out)

        ref = _glu_conv_ref(x, w1, b1, w2, b2, st)
        if fuse:
            ref = _bn_elu_ref(ref, bn_s, bn_t)
        assert out.shape == ref.shape, ("enc", idx, out.shape, ref.shape)
        max_err = float(jnp.max(jnp.abs(out - ref)))
        assert jnp.allclose(out, ref, atol=5e-4, rtol=5e-4), ("enc", idx, max_err)

    # ------------------ GluConvTranspose2d (decoder) checks ------------------
    dec_configs = [
        # (Cin, Cout, kernel, stride, out_pad,  N, H, W, fuse)
        (64, 16, (1, 3), (1, 2), (0, 1), 2, 8, 10, False),  # conv2_t_* style
        (32, 1,  (1, 3), (1, 2), (0, 0), 2, 8, 11, False),  # conv1_t_* (Cout=1)
        (8,  8,  (3, 3), (2, 2), (1, 1), 2, 8, 8,  False),  # generic 2-D stride
        (64, 16, (1, 3), (1, 2), (0, 1), 2, 8, 10, True),   # fused BN+ELU path
    ]
    for idx, (cin, cout, ks, st, op, nb, hh, ww, fuse) in enumerate(dec_configs):
        key, kx, k1, k2, k3, k4, k5, k6 = jax.random.split(key, 8)
        x = jax.random.normal(kx, (nb, cin, hh, ww), jnp.float32)
        wshape = (cin, cout) + ks                   # ConvTranspose2d weight layout
        scale = 0.1
        w1 = scale * jax.random.normal(k1, wshape, jnp.float32)
        b1 = scale * jax.random.normal(k2, (cout,), jnp.float32)
        w2 = scale * jax.random.normal(k3, wshape, jnp.float32)
        b2 = scale * jax.random.normal(k4, (cout,), jnp.float32)
        bn_s = 1.0 + 0.1 * jax.random.normal(k5, (cout,), jnp.float32)
        bn_t = 0.1 * jax.random.normal(k6, (cout,), jnp.float32)

        out = glu_conv_transpose2d(x, w1, b1, w2, b2, stride=st,
                                   output_padding=op,
                                   bn_scale=bn_s, bn_shift=bn_t,
                                   fuse_bn_elu=fuse)
        out = jax.block_until_ready(out)

        ref = _glu_convt_ref(x, w1, b1, w2, b2, st, op)
        if fuse:
            ref = _bn_elu_ref(ref, bn_s, bn_t)
        assert out.shape == ref.shape, ("dec", idx, out.shape, ref.shape)
        max_err = float(jnp.max(jnp.abs(out - ref)))
        assert jnp.allclose(out, ref, atol=5e-4, rtol=5e-4), ("dec", idx, max_err)

    print("KERNEL_OK")
</pallas_src>

<mosaic_0001>
module attributes {stable_mosaic.version = 11 : i64} {
  func.func @kernel(%arg0: i32, %arg1: i32, %arg2: memref<32x96xf32, #tpu.memory_space<vmem>>, %arg3: memref<1x96x128xf32, #tpu.memory_space<vmem>>, %arg4: memref<32x1xf32, #tpu.memory_space<vmem>>, %arg5: memref<1x16x128xf32, #tpu.memory_space<vmem>>) attributes {dimension_semantics = [#tpu.dimension_semantics<parallel>, #tpu.dimension_semantics<parallel>], iteration_bounds = array<i64: 2, 1>, scalar_prefetch = 0 : i64, scratch_operands = 0 : i64, tpu.core_type = #tpu.core_type<tc>, window_params = [{pipeline_mode = #tpu.pipeline_mode<synchronous>, transform_indices = @transform_0, window_bounds = array<i64: 32, 96>}, {transform_indices = @transform_1, window_bounds = array<i64: 1, 96, 128>}, {pipeline_mode = #tpu.pipeline_mode<synchronous>, transform_indices = @transform_2, window_bounds = array<i64: 32, 1>}, {transform_indices = @transform_3, window_bounds = array<i64: 1, 16, 128>}]} {
    %c0 = arith.constant 0 : index
    %c0_0 = arith.constant 0 : index
    %0 = vector.load %arg2[%c0, %c0_0] : memref<32x96xf32, #tpu.memory_space<vmem>>, vector<32x96xf32>
    %c0_1 = arith.constant 0 : index
    %c0_2 = arith.constant 0 : index
    %c0_3 = arith.constant 0 : index
    %1 = vector.load %arg3[%c0_1, %c0_2, %c0_3] : memref<1x96x128xf32, #tpu.memory_space<vmem>>, vector<1x96x128xf32>
    %2 = vector.shape_cast %1 : vector<1x96x128xf32> to vector<96x128xf32>
    %cst = arith.constant dense<0.000000e+00> : vector<32x128xf32>
    %3 = tpu.matmul %0, %2, %cst {dimension_numbers = #tpu.dot_dimension_numbers<[1], [0], [0], [1], [0, 0, 1, 1], [], []>} : vector<32x96xf32>, vector<96x128xf32>, vector<32x128xf32> -> vector<32x128xf32>
    %c0_4 = arith.constant 0 : index
    %c0_5 = arith.constant 0 : index
    %4 = vector.load %arg4[%c0_4, %c0_5] : memref<32x1xf32, #tpu.memory_space<vmem>>, vector<32x1xf32>
    %5 = vector.broadcast %4 : vector<32x1xf32> to vector<32x128xf32>
    %6 = arith.addf %3, %5 : vector<32x128xf32>
    %7 = vector.extract_strided_slice %6 {offsets = [0, 0], sizes = [16, 128], strides = [1, 1]} : vector<32x128xf32> to vector<16x128xf32>
    %8 = vector.extract_strided_slice %6 {offsets = [16, 0], sizes = [16, 128], strides = [1, 1]} : vector<32x128xf32> to vector<16x128xf32>
    %9 = arith.negf %8 : vector<16x128xf32>
    %10 = math.exp %9 : vector<16x128xf32>
    %cst_6 = arith.constant 1.000000e+00 : f32
    %11 = vector.broadcast %cst_6 : f32 to vector<16x128xf32>
    %12 = arith.addf %11, %10 : vector<16x128xf32>
    %13 = arith.divf %11, %12 : vector<16x128xf32>
    %14 = arith.mulf %7, %13 : vector<16x128xf32>
    %c0_7 = arith.constant 0 : index
    %c0_8 = arith.constant 0 : index
    %c0_9 = arith.constant 0 : index
    %15 = vector.load %arg5[%c0_7, %c0_8, %c0_9] : memref<1x16x128xf32, #tpu.memory_space<vmem>>, vector<1x16x128xf32>
    %16 = vector.shape_cast %15 : vector<1x16x128xf32> to vector<16x128xf32>
    %17 = vector.shape_cast %14 : vector<16x128xf32> to vector<1x16x128xf32>
    tpu.vector_store %arg5[%c0_7, %c0_8, %c0_9], %17 {strides = array<i32>} : memref<1x16x128xf32, #tpu.memory_space<vmem>>, vector<1x16x128xf32>,
    return
  }
  func.func @transform_0(%arg0: i32, %arg1: i32) -> (i32, i32) {
    %c0_i32 = arith.constant 0 : i32
    %c0_i32_0 = arith.constant 0 : i32
    %c0_i32_1 = arith.constant 0 : i32
    return %c0_i32, %c0_i32_0 : i32, i32
  }
  func.func @transform_1(%arg0: i32, %arg1: i32) -> (i32, i32, i32) {
    %c0_i32 = arith.constant 0 : i32
    %c0_i32_0 = arith.constant 0 : i32
    return %arg0, %c0_i32, %arg1 : i32, i32, i32
  }
  func.func @transform_2(%arg0: i32, %arg1: i32) -> (i32, i32) {
    %c0_i32 = arith.constant 0 : i32
    %c0_i32_0 = arith.constant 0 : i32
    %c0_i32_1 = arith.constant 0 : i32
    return %c0_i32, %c0_i32_0 : i32, i32
  }
  func.func @transform_3(%arg0: i32, %arg1: i32) -> (i32, i32, i32) {
    %c0_i32 = arith.constant 0 : i32
    %c0_i32_0 = arith.constant 0 : i32
    return %arg0, %c0_i32, %arg1 : i32, i32, i32
  }
}

</mosaic_0001>

<llo_original>
// kernel: glu_conv2d.1
$region0: #{glu_conv2d.1}
  #allocation0 [shape = 'u32[]', space=smem, size = 0x4, offset = 0x4, fixed_abs, tag = 'smem constant byte address 0x4 - core index']
  #allocation1 [shape = 'u32[144,128]{1,0:T(1,128)}', space=vmem, size = 0x12000, scoped, tag = 'internal scratch']
  %s0 = inlined_call_operand.vmem [shape: f32[32,96], index: 0, kind: input, shape index: {}]
  %s1 = inlined_call_operand.vmem [shape: f32[2,96,128], index: 1, kind: input, shape index: {}]
  %s2 = inlined_call_operand.vmem [shape: f32[32,1], index: 2, kind: input, shape index: {}]
  %s3 = inlined_call_operand.vmem [shape: f32[2,16,128], index: 3, kind: output, shape index: {}]
  %s4 = sld [smem:[#allocation0]]
  $region45: #{glu_conv2d.1} parent=0
    _
  %s6 = ssub.s32 1, %s4
  %s7 = scalar_select 0, %s6, %s4
  loop: start=0, step=1, limit=4
  $region2: #{glu_conv2d.1} parent=0 // loop_pre_header
    _
  $region3: #{glu_conv2d.1} parent=0 // loop_header
    %s9 = sphi 0, %s13
    %p10 = scmp.ge.s32.totalorder %s9, 4
    %s16 = sphi 0, %s28
    %s17 = sphi 0, %s24
    %s18 = sphi 0, %s16
    %s19 = sphi 0, %s17
    %s20 = sphi 0, %s18
    %s21 = sphi 0, %s19
    %s29 = sphi 0, %s29
    %s31 = sphi 0, %s29
    %s32 = sphi 0, %s31
    %s46 = sphi 0, %s32
    %s54 = sphi 0, %s56
    %s57 = sphi 0, %s54
    %s58 = sphi 0, %s57
    %s74 = sphi 0, %s58
    %s78 = sphi 0, %s78
    %s80 = sphi 0, %s78
    %s81 = sphi 0, %s80
    %s95 = sphi 0, %s81
    %s103 = sphi 0, %s105
    %s106 = sphi 0, %s103
    %s107 = sphi 0, %s106
    %s123 = sphi 0, %s107
  $region4: #{glu_conv2d.1} parent=0 // loop_header_branch
    %12 = sbr.rel (%p10) target = $region8
  $region5: #{glu_conv2d.1} parent=0 // loop_body
    %s14 = ssub.s32 %s9, 1
    %s15 = ssub.s32 %s9, 2
    %s22 = sadd.s32 1, %s17
    %p23 = scmp.ge.s32.totalorder %s22, 1
    %s24 = scalar_select %p23, 0, %s22
    %s25 = sadd.s32 1, %s16
    %s26 = scalar_select %p23, %s25, %s16
    %p27 = scmp.ge.s32.totalorder %s26, 2
    %s28 = scalar_select %p27, 0, %s26
    %s30 = sadd.s32 %s29, 1
    %p33 = scmp.eq.s32.totalorder %s9, 1
    %p34 = scmp.ne.s32.totalorder %s29, %s31
    %p35 = scmp.eq.s32.totalorder %s9, 0
    %p36 = por %p34, %p35
    %p37 = scmp.ne.s32.totalorder %s29, %s31
    %p38 = scmp.eq.s32.totalorder %s14, 1
    %p39 = por %p37, %p38
    %p40 = scmp.ne.s32.totalorder %s31, %s32
    %p41 = scmp.eq.s32.totalorder %s14, 0
    %p42 = por %p40, %p41
    %p43 = scmp.ne.s32.totalorder %s31, %s32
    %p44 = scmp.eq.s32.totalorder %s15, 1
    %p45 = por %p43, %p44
    %p47 = scmp.ne.s32.totalorder %s32, %s46
    %p48 = scmp.eq.s32.totalorder %s15, 0
    %p49 = por %p47, %p48
    %s50 = ssub.s32 %s16, %s28
    %s51 = ssub.s32 %s17, %s24
    %s52 = sor.u32 %s50, %s51
    %p53 = scmp.eq.s32.totalorder %s52, 0
    %s55 = sadd.s32 %s54, 1
    %s56 = scalar_select %p53, %s54, %s55
    %p59 = pneg %p53
    %p60 = scmp.eq.s32.totalorder %s9, 1
    %p61 = por %p59, %p60
    %p62 = scmp.ne.s32.totalorder %s54, %s57
    %p63 = scmp.eq.s32.totalorder %s9, 0
    %p64 = por %p62, %p63
    %p65 = scmp.ne.s32.totalorder %s54, %s57
    %p66 = scmp.eq.s32.totalorder %s14, 1
    %p67 = por %p65, %p66
    %p68 = scmp.ne.s32.totalorder %s57, %s58
    %p69 = scmp.eq.s32.totalorder %s14, 0
    %p70 = por %p68, %p69
    %p71 = scmp.ne.s32.totalorder %s57, %s58
    %p72 = scmp.eq.s32.totalorder %s15, 1
    %p73 = por %p71, %p72
    %p75 = scmp.ne.s32.totalorder %s58, %s74
    %p76 = scmp.eq.s32.totalorder %s15, 0
    %p77 = por %p75, %p76
    %s79 = sadd.s32 %s78, 1
    %p82 = scmp.eq.s32.totalorder %s9, 1
    %p83 = scmp.ne.s32.totalorder %s78, %s80
    %p84 = scmp.eq.s32.totalorder %s9, 0
    %p85 = por %p83, %p84
    %p86 = scmp.ne.s32.totalorder %s78, %s80
    %p87 = scmp.eq.s32.totalorder %s14, 1
    %p88 = por %p86, %p87
    %p89 = scmp.ne.s32.totalorder %s80, %s81
    %p90 = scmp.eq.s32.totalorder %s14, 0
    %p91 = por %p89, %p90
    %p92 = scmp.ne.s32.totalorder %s80, %s81
    %p93 = scmp.eq.s32.totalorder %s15, 1
    %p94 = por %p92, %p93
    %p96 = scmp.ne.s32.totalorder %s81, %s95
    %p97 = scmp.eq.s32.totalorder %s15, 0
    %p98 = por %p96, %p97
    %s99 = ssub.s32 %s16, %s28
    %s100 = ssub.s32 %s17, %s24
    %s101 = sor.u32 %s99, %s100
    %p102 = scmp.eq.s32.totalorder %s101, 0
    %s104 = sadd.s32 %s103, 1
    %s105 = scalar_select %p102, %s103, %s104
    %p108 = pneg %p102
    %p109 = scmp.eq.s32.totalorder %s9, 1
    %p110 = por %p108, %p109
    %p111 = scmp.ne.s32.totalorder %s103, %s106
    %p112 = scmp.eq.s32.totalorder %s9, 0
    %p113 = por %p111, %p112
    %p114 = scmp.ne.s32.totalorder %s103, %s106
    %p115 = scmp.eq.s32.totalorder %s14, 1
    %p116 = por %p114, %p115
    %p117 = scmp.ne.s32.totalorder %s106, %s107
    %p118 = scmp.eq.s32.totalorder %s14, 0
    %p119 = por %p117, %p118
    %p120 = scmp.ne.s32.totalorder %s106, %s107
    %p121 = scmp.eq.s32.totalorder %s15, 1
    %p122 = por %p120, %p121
    %p124 = scmp.ne.s32.totalorder %s107, %s123
    %p125 = scmp.eq.s32.totalorder %s15, 0
    %p126 = por %p124, %p125
    %p127 = scmp.le.s32.totalorder 1, %s9
    %p128 = scmp.lt.s32.totalorder %s9, 3
    %p129 = pnand %p127, %p128
    %p130 = pneg %p129
    // Predicated region
    $region9: #{glu_conv2d.1} parent=5 // pred_check
      _
    $region10: #{glu_conv2d.1} parent=5 // pred_check_branch
      %132 = sbr.rel (%p129) target = $region12
    $region11: #{glu_conv2d.1} parent=5 // pred_region
      %s133 = ssub.s32 %s9, 1
      // Predicated region
      $region13: #{glu_conv2d.1} parent=11 // pred_check
        %p134 = pneg %p42
      $region14: #{glu_conv2d.1} parent=11 // pred_check_branch
        %136 = sbr.rel (%p134) target = $region16
      $region15: #{glu_conv2d.1} parent=11 // pred_region
        _
      $region16: #{glu_conv2d.1} parent=11 // pred_fallthru
        _
      // Predicated region
      $region17: #{glu_conv2d.1} parent=11 // pred_check
        %p137 = pneg %p91
      $region18: #{glu_conv2d.1} parent=11 // pred_check_branch
        %139 = sbr.rel (%p137) target = $region20
      $region19: #{glu_conv2d.1} parent=11 // pred_region
        _
      $region20: #{glu_conv2d.1} parent=11 // pred_fallthru
        _
    $region12: #{glu_conv2d.1} parent=5 // pred_fallthru
      _
    %p140 = scmp.lt.s32.totalorder %s9, 2
    // Predicated region
    $region21: #{glu_conv2d.1} parent=5 // pred_check
      %p141 = pneg %p140
    $region22: #{glu_conv2d.1} parent=5 // pred_check_branch
      %143 = sbr.rel (%p141) target = $region24
    $region23: #{glu_conv2d.1} parent=5 // pred_region
      // Predicated region
      $region25: #{glu_conv2d.1} parent=23 // pred_check
        %p144 = pneg %p64
      $region26: #{glu_conv2d.1} parent=23 // pred_check_branch
        %146 = sbr.rel (%p144) target = $region28
      $region27: #{glu_conv2d.1} parent=23 // pred_region
        %p147 = scmp.lt.s32.totalorder %s16, 1
        %s148 = scalar_select %p147, %s16, 1
        %p149 = scmp.lt.s32.totalorder %s17, 0
        %s150 = scalar_select %p149, %s17, 0
        %s151 = smul.addr %s148, 12
        %s152 = sadd.s32 %s150, %s151
        %s153 = smul.addr %s152, 8
        %s154 = scalar_lea.vmem %s1, %s153
      $region28: #{glu_conv2d.1} parent=23 // pred_fallthru
        _
    $region24: #{glu_conv2d.1} parent=5 // pred_fallthru
      _
    %p155 = scmp.le.s32.totalorder 1, %s9
    %p156 = scmp.lt.s32.totalorder %s9, 3
    %p157 = pnand %p155, %p156
    %p158 = pneg %p157
    // Predicated region
    $region29: #{glu_conv2d.1} parent=5 // pred_check
      _
    $region30: #{glu_conv2d.1} parent=5 // pred_check_branch
      %160 = sbr.rel (%p157) target = $region32
    $region31: #{glu_conv2d.1} parent=5 // pred_region
      %s161 = ssub.s32 %s9, 1
      %p162 = pneg %p42
      %p163 = pneg %p39
      %p164 = scmp.lt.s32.totalorder %s18, 1
      %s165 = scalar_select %p164, %s18, 1
      %p166 = scmp.lt.s32.totalorder %s19, 0
      %s167 = scalar_select %p166, %s19, 0
      %s168 = smul.addr %s165, 12
      %s169 = sadd.s32 %s167, %s168
      %s170 = smul.addr %s169, 8
      %s171 = scalar_lea.vmem %s1, %s170
      %p172 = pneg %p70
      %p173 = pneg %p67
      %p174 = pneg %p91
      %p175 = pneg %p88
      %p176 = pneg %p119
      %p177 = pneg %p116
      %p178 = scmp.lt.s32.totalorder %s18, 1
      %s179 = scalar_select %p178, %s18, 1
      %p180 = scmp.lt.s32.totalorder %s19, 0
      %s181 = scalar_select %p180, %s19, 0
      %s182 = smul.addr %s179, 2
      %s183 = sadd.s32 %s181, %s182
      %s184 = smul.addr %s183, 8
      %s185 = scalar_lea.vmem %s3, %s184
      %p186 = scmp.lt.s32.totalorder %s18, 1
      %s187 = scalar_select %p186, %s18, 1
      %p188 = scmp.lt.s32.totalorder %s19, 0
      %s189 = scalar_select %p188, %s19, 0
      %s190 = smul.addr %s187, 12
      %s191 = sadd.s32 %s189, %s190
      %s192 = smul.addr %s191, 8
      %s193 = scalar_lea.vmem %s1, %s192
      %p194 = scmp.lt.s32.totalorder %s18, 1
      %s195 = scalar_select %p194, %s18, 1
      %p196 = scmp.lt.s32.totalorder %s19, 0
      %s197 = scalar_select %p196, %s19, 0
      %s198 = smul.addr %s195, 2
      %s199 = sadd.s32 %s197, %s198
      %s200 = smul.addr %s199, 8
      %s201 = scalar_lea.vmem %s3, %s200
      %v202 = vld [vmem:[%s0] sm:$0xff]
      %v203 = vld [vmem:[%s0 + $0x8] sm:$0xff]
      %v204 = vld [vmem:[%s0 + $0x10] sm:$0xff]
      %v205 = vld [vmem:[%s0 + $0x18] sm:$0xff]
      %v206 = vld [vmem:[%s193] sm:$0xff]
      %v207 = vld [vmem:[%s193 + $0x8] sm:$0xff]
      %v208 = vld [vmem:[%s193 + $0x10] sm:$0xff]
      %v209 = vld [vmem:[%s193 + $0x18] sm:$0xff]
      %v210 = vld [vmem:[%s193 + $0x20] sm:$0xff]
      %v211 = vld [vmem:[%s193 + $0x28] sm:$0xff]
      %v212 = vld [vmem:[%s193 + $0x30] sm:$0xff]
      %v213 = vld [vmem:[%s193 + $0x38] sm:$0xff]
      %v214 = vld [vmem:[%s193 + $0x40] sm:$0xff]
      %v215 = vld [vmem:[%s193 + $0x48] sm:$0xff]
      %v216 = vld [vmem:[%s193 + $0x50] sm:$0xff]
      %v217 = vld [vmem:[%s193 + $0x58] sm:$0xff]
      %v218 = vld [vmem:[%s2] sm:$0xff]
      %v219 = vld [vmem:[%s2 + $0x8] sm:$0xff]
      %v220 = vld [vmem:[%s2 + $0x10] sm:$0xff]
      %v221 = vld [vmem:[%s2 + $0x18] sm:$0xff]
      %223 = vset.pattern.permute.xlu0 0
      %224 = vperm.xlu0 %223, %v218
      %v225 = vpop.permute.xlu0 %224
      %228 = vset.pattern.permute.xlu0 0
      %229 = vperm.xlu0 %228, %v219
      %v230 = vpop.permute.xlu0 %229
      %233 = vset.pattern.permute.xlu0 0
      %234 = vperm.xlu0 %233, %v220
      %v235 = vpop.permute.xlu0 %234
      %238 = vset.pattern.permute.xlu0 0
      %239 = vperm.xlu0 %238, %v221
      %v240 = vpop.permute.xlu0 %239
      %vm242 = vcmask 785408
      %v244 = vsel %vm242, %v202, 0
      %v247 = vsel %vm242, %v203, 0
      %v250 = vsel %vm242, %v204, 0
      %v253 = vsel %vm242, %v205, 0
      %255 = vmatprep.subr.mxu0 0.0
      %256 = vmatpush1.msra.mxu0 %v206
      %257 = vmatprep.subr.mxu0 0.0
      %258 = vmatpush1.msra.mxu0 %v207
      %259 = vmatprep.subr.mxu0 0.0
      %260 = vmatpush1.msra.mxu0 %v208
      %261 = vmatprep.subr.mxu0 0.0
      %262 = vmatpush1.msra.mxu0 %v209
      %263 = vmatprep.subr.mxu0 0.0
      %264 = vmatpush1.msra.mxu0 %v210
      %265 = vmatprep.subr.mxu0 0.0
      %266 = vmatpush1.msra.mxu0 %v211
      %267 = vmatprep.subr.mxu0 0.0
      %268 = vmatpush1.msra.mxu0 %v212
      %269 = vmatprep.subr.mxu0 0.0
      %270 = vmatpush1.msra.mxu0 %v213
      %271 = vmatprep.subr.mxu0 0.0
      %272 = vmatpush1.msra.mxu0 %v214
      %273 = vmatprep.subr.mxu0 0.0
      %274 = vmatpush1.msra.mxu0 %v215
      %275 = vmatprep.subr.mxu0 0.0
      %276 = vmatpush1.msra.mxu0 %v216
      %277 = vmatprep.subr.mxu0 0.0
      %278 = vmatpush1.msra.mxu0 %v217
      %279 = vmatprep.subr.mxu0 0.0
      %280 = vmatpush1.msra.mxu0 0.0
      %281 = vmatprep.subr.mxu0 0.0
      %282 = vmatpush1.msra.mxu0 0.0
      %283 = vmatprep.subr.mxu0 0.0
      %284 = vmatpush1.msra.mxu0 0.0
      %285 = vmatprep.subr.mxu0 0.0
      %286 = vmatpush1.msra.mxu0 0.0
      %287 = vmatprep.subr.mxu0 0.0
      %288 = vmatpush1.msra.mxu0 0.0
      %289 = vmatprep.subr.mxu0 0.0
      %290 = vmatpush1.msra.mxu0 0.0
      %291 = vmatprep.subr.mxu0 0.0
      %292 = vmatpush1.msra.mxu0 0.0
      %293 = vmatprep.subr.mxu0 0.0
      %294 = vmatpush1.msra.mxu0 0.0
      %295 = vmatprep.subr.mxu0 0.0
      %296 = vmatpush1.msra.mxu0 0.0
      %297 = vmatprep.subr.mxu0 0.0
      %298 = vmatpush1.msra.mxu0 0.0
      %299 = vmatprep.subr.mxu0 0.0
      %300 = vmatpush1.msra.mxu0 0.0
      %301 = vmatprep.subr.mxu0 0.0
      %302 = vmatpush1.msra.mxu0 0.0
      %303 = vmatprep.subr.mxu0 0.0
      %304 = vmatpush1.msra.mxu0 0.0
      %305 = vmatprep.subr.mxu0 0.0
      %306 = vmatpush1.msra.mxu0 0.0
      %307 = vmatprep.subr.mxu0 0.0
      %308 = vmatpush1.msra.mxu0 0.0
      %309 = vmatprep.subr.mxu0 0.0
      %310 = vmatpush1.msra.mxu0 0.0
      %311 = vmatprep.subr.mxu0 0.0
      %312 = vmatpush1.msra.mxu0 0.0
      %313 = vmatprep.subr.mxu0 0.0
      %314 = vmatpush1.msra.mxu0 0.0
      %315 = vmatprep.subr.mxu0 0.0
      %316 = vmatpush1.msra.mxu0 0.0
      %317 = vmatprep.subr.mxu0 0.0
      %318 = vmatpush1.msra.mxu0 0.0
      %319 = vmatprep.mubr.f32.mxu0 0.0
      %320 = vmatmul.mubr.f32.gmra.mrb[0].mxu0 %v244
      %v321 = vpop.f32.mrb[0].mxu0
      %v322 = vadd.f32 %v225, %v321
      %v323 = vpop.f32.mrb[0].mxu0
      %324 = vmatprep.mubr.f32.mxu0 0.0
      %325 = vmatmul.mubr.f32.gmra.mrb[0].mxu0 %v247
      %v326 = vpop.f32.mrb[0].mxu0
      %v327 = vadd.f32 %v230, %v326
      %v328 = vpop.f32.mrb[0].mxu0
      %329 = vmatprep.mubr.f32.mxu0 0.0
      %330 = vmatmul.mubr.f32.gmra.mrb[0].mxu0 %v250
      %v331 = vpop.f32.mrb[0].mxu0
      %v332 = vadd.f32 %v235, %v331
      %v333 = vpop.f32.mrb[0].mxu0
      %334 = vmatprep.mubr.f32.mxu0 0.0
      %335 = vmatmul.mubr.f32.gmra.mrb[0].mxu0 %v253
      %v336 = vpop.f32.mrb[0].mxu0
      %v337 = vadd.f32 %v240, %v336
      %v338 = vpop.f32.mrb[0].mxu0
      %339 = vdwg.mxu0
      %v340 = vxor.u32 %v332, 2147483648
      %v341 = vxor.u32 %v337, 2147483648
      %v342 = vmul.f32 %v340, 1.442695
      %v343 = vpow.pop %v342
      %v344 = vmul.f32 %v341, 1.442695
      %v345 = vpow.pop %v344
      %v346 = vadd.f32 %v343, 1.0
      %v347 = vadd.f32 %v345, 1.0
      %v348 = vrcp.pop %v346
      %v349 = vmul.f32 1.0, %v348
      %v350 = vrcp.pop %v347
      %v351 = vmul.f32 1.0, %v350
      %v352 = vmul.f32 %v322, %v349
      %v353 = vmul.f32 %v327, %v351
      %354 = vst [vmem:[%s201] sm:$0xff] %v352
      %355 = vst [vmem:[%s201 + $0x8] sm:$0xff] %v353
      %p356 = scmp.lt.s32.totalorder %s18, 1
      %s357 = scalar_select %p356, %s18, 1
      %p358 = scmp.lt.s32.totalorder %s19, 0
      %s359 = scalar_select %p358, %s19, 0
      %s360 = smul.addr %s357, 2
      %s361 = sadd.s32 %s359, %s360
      %s362 = smul.addr %s361, 8
      %s363 = scalar_lea.vmem %s3, %s362
      // Predicated region
      $region33: #{glu_conv2d.1} parent=31 // pred_check
        %p364 = pneg %p116
      $region34: #{glu_conv2d.1} parent=31 // pred_check_branch
        %366 = sbr.rel (%p364) target = $region36
      $region35: #{glu_conv2d.1} parent=31 // pred_region
        _
      $region36: #{glu_conv2d.1} parent=31 // pred_fallthru
        _
    $region32: #{glu_conv2d.1} parent=5 // pred_fallthru
      _
    %p367 = scmp.le.s32.totalorder 2, %s9
    // Predicated region
    $region37: #{glu_conv2d.1} parent=5 // pred_check
      %p368 = pneg %p367
    $region38: #{glu_conv2d.1} parent=5 // pred_check_branch
      %370 = sbr.rel (%p368) target = $region40
    $region39: #{glu_conv2d.1} parent=5 // pred_region
      %s371 = ssub.s32 %s9, 2
      // Predicated region
      $region41: #{glu_conv2d.1} parent=39 // pred_check
        %p372 = pneg %p122
      $region42: #{glu_conv2d.1} parent=39 // pred_check_branch
        %374 = sbr.rel (%p372) target = $region44
      $region43: #{glu_conv2d.1} parent=39 // pred_region
        %p375 = scmp.lt.s32.totalorder %s20, 1
        %s376 = scalar_select %p375, %s20, 1
        %p377 = scmp.lt.s32.totalorder %s21, 0
        %s378 = scalar_select %p377, %s21, 0
        %s379 = smul.addr %s376, 2
        %s380 = sadd.s32 %s378, %s379
        %s381 = smul.addr %s380, 8
        %s382 = scalar_lea.vmem %s3, %s381
      $region44: #{glu_conv2d.1} parent=39 // pred_fallthru
        _
    $region40: #{glu_conv2d.1} parent=5 // pred_fallthru
      _
  $region6: #{glu_conv2d.1} parent=0 // loop_footer
    %s13 = sadd.s32 1, %s9
  $region7: #{glu_conv2d.1} parent=0 // loop_footer_branch
    %8 = sbr.rel target = $region3
  $region8: #{glu_conv2d.1} parent=0 // loop_exit
    _

</llo_original>
